<compile_context>
chip_gen: v5e
topology: v5e:2x2
jax: 0.10.0
libtpu: 0.0.40
codegen_flags: <defaults>
</compile_context>

<pallas_src>
import functools

import jax
import jax.numpy as jnp
from jax.experimental import pallas as pl
from jax.experimental.pallas import tpu as pltpu


def _round_up(n, m):
    return ((n + m - 1) // m) * m


def hexblock_kernel(x_ref, w_ref, b_ref, o_ref, *, Wp, P0, L, residual):
    """One batch element.

    x_ref: (1, Cp_in, F)      zero-padded image, (Hp, Wp) flattened row-major on lanes
    w_ref: (Cp_out, 7*Cp_in)  fused tap weights (transposed, concatenated along K)
    b_ref: (Cp_out, 1)        bias
    o_ref: (1, Cp_out, L)     flat output block; offset j = r*Wp + c
    """
    x = x_ref[0]                                   # (Cp_in, F)
    cp = x.shape[0]

    def xtap(dr):                                  # centre-column tap, row r+dr
        s = P0 + dr * Wp
        return x[:, s:s + L]

    # Wp is even and every y-tap slice starts at an even flat index, so the padded-column
    # parity mask restricted to a slice is simply (lane % 2 == 0).
    lane = jax.lax.broadcasted_iota(jnp.int32, (cp, L), 1)
    even_pc = (lane % 2) == 0

    def ytap(off):                                 # side-column tap at offset `off` from P0
        s = P0 + off
        return jnp.where(even_pc, x[:, s - Wp:s - Wp + L], x[:, s:s + L])

    centre = xtap(0)
    xcat = jnp.concatenate(
        [xtap(-1), centre, xtap(1),                # centre column rows r-1, r, r+1
         ytap(-1), ytap(Wp - 1),                   # left side column, rows 0 and 1
         ytap(1), ytap(Wp + 1)],                   # right side column, rows 0 and 1
        axis=0)                                    # (7*Cp_in, L)  mini-im2col

    out = jnp.dot(w_ref[...], xcat, preferred_element_type=jnp.float32)   # (Cp_out, L)
    out = out + b_ref[...]                         # bias, lane-broadcast
    if residual:
        out = out + centre                         # reuse centre tap (Cin == Cout)
    out = jnp.maximum(out, 0.0)                    # ReLU
    o_ref[0] = out.astype(o_ref.dtype)


def hexblock_forward(x_nchw, w0, w1, bias, *, residual=True):
    B, Cin, H, W = x_nchw.shape
    Cout = w0.shape[-1]
    if residual:
        assert Cin == Cout, "residual add requires in_channels == out_channels"
    assert W % 2 == 0, "parity-folded flat layout assumes an even image width"

    cp_in = _round_up(Cin, 8)                  # channels padded to full sublane groups
    cp_out = _round_up(Cout, 8)
    Wp = W + 2                                 # column halo
    P0 = Wp + 1                                # flat index of output pixel (0, 0)
    L = _round_up(H * Wp, 128)                 # lane-dense flat output length
    F = _round_up(2 * Wp + 2 + L, 128)         # flat input length (covers largest tap read)

    # channel pad -> column halo -> flatten rows -> top-row halo + lane-alignment tail.
    xpad = jnp.pad(x_nchw, ((0, 0), (0, cp_in - Cin), (0, 0), (1, 1)))
    xflat = xpad.reshape(B, cp_in, H * Wp)
    xflat = jnp.pad(xflat, ((0, 0), (0, 0), (Wp, F - Wp - H * Wp)))

    # Fused weights: taps ordered exactly as the kernel builds its im2col operand.
    taps = [w0[0], w0[1], w0[2], w1[0, 0], w1[1, 0], w1[0, 1], w1[1, 1]]   # each (Cin, Cout)

    def pad_t(w):                              # (Cin, Cout) -> (Cp_out, Cp_in)
        return jnp.pad(w, ((0, cp_in - Cin), (0, cp_out - Cout))).T

    wcat = jnp.concatenate([pad_t(w) for w in taps], axis=1)               # (Cp_out, 7*Cp_in)
    bvec = jnp.pad(bias, (0, cp_out - Cout)).reshape(cp_out, 1)

    kernel = functools.partial(hexblock_kernel, Wp=Wp, P0=P0, L=L, residual=residual)
    out_flat = pl.pallas_call(
        kernel,
        out_shape=jax.ShapeDtypeStruct((B, cp_out, L), x_nchw.dtype),
        grid_spec=pltpu.PrefetchScalarGridSpec(
            num_scalar_prefetch=0,
            grid=(B,),
            in_specs=[
                pl.BlockSpec((1, cp_in, F), lambda b: (b, 0, 0)),
                pl.BlockSpec((cp_out, 7 * cp_in), lambda b: (0, 0)),
                pl.BlockSpec((cp_out, 1), lambda b: (0, 0)),
            ],
            out_specs=pl.BlockSpec((1, cp_out, L), lambda b: (b, 0, 0)),
        ),
        compiler_params=pltpu.CompilerParams(dimension_semantics=("parallel",)),
    )(xflat, wcat, bvec)

    # Drop channel padding, the padded columns and the lane-alignment tail:
    # real output (r, c) lives at flat offset r*Wp + c.
    out = out_flat[:, :Cout, :H * Wp].reshape(B, Cout, H, Wp)[:, :, :, :W]
    return out


def hexblock_reference(x_nchw, w0, w1, bias, *, residual=True):
    """Pure-JAX reference with the hexagdly kernel_size=1 stencil semantics."""
    B, Cin, H, W = x_nchw.shape
    Cout = w0.shape[-1]
    x = jnp.transpose(x_nchw, (0, 2, 3, 1))
    xp = jnp.pad(x, ((0, 0), (1, 1), (1, 1), (0, 0)))

    def tap(dr, dc):
        return xp[:, 1 + dr:1 + dr + H, 1 + dc:1 + dc + W, :]

    def mm(a, w):
        return jnp.einsum('bhwc,co->bhwo', a, w)

    acc = mm(tap(-1, 0), w0[0]) + mm(tap(0, 0), w0[1]) + mm(tap(1, 0), w0[2])
    acc_even = (mm(tap(-1, -1), w1[0, 0]) + mm(tap(0, -1), w1[1, 0]) +
                mm(tap(-1, +1), w1[0, 1]) + mm(tap(0, +1), w1[1, 1]))
    acc_odd = (mm(tap(0, -1), w1[0, 0]) + mm(tap(1, -1), w1[1, 0]) +
               mm(tap(0, +1), w1[0, 1]) + mm(tap(1, +1), w1[1, 1]))
    even_mask = (jnp.arange(W) % 2 == 0)[None, None, :, None]
    out = acc + jnp.where(even_mask, acc_even, acc_odd) + bias[None, None, None, :]
    if residual:
        out = out + x
    out = jnp.maximum(out, 0.0)
    return jnp.transpose(out, (0, 3, 1, 2))


if __name__ == "__main__":
    B, C, H, W = 2, 4, 16, 16   # in_channels == out_channels so residual add is valid
    key = jax.random.PRNGKey(0)
    kx, k0, k1, kb = jax.random.split(key, 4)

    x = jax.random.normal(kx, (B, C, H, W), dtype=jnp.float32)

    # deterministic synthetic weights (uniform, ~1/sqrt(fan_in) with fan_in = 7 * C taps)
    fan_in = 7 * C
    bound = 1.0 / jnp.sqrt(jnp.float32(fan_in))
    w0 = jax.random.uniform(k0, (3, C, C), jnp.float32, -bound, bound)      # centre-column taps
    w1 = jax.random.uniform(k1, (2, 2, C, C), jnp.float32, -bound, bound)   # side-column taps
    bias = jax.random.uniform(kb, (C,), jnp.float32, -bound, bound)

    fwd = jax.jit(functools.partial(hexblock_forward, residual=True))
    out = jax.block_until_ready(fwd(x, w0, w1, bias))
    ref = jax.block_until_ready(hexblock_reference(x, w0, w1, bias, residual=True))

    assert out.shape == (B, C, H, W)
    # The fused dot runs on the MXU with default f32 precision (bf16 multiplies, f32
    # accumulation), so allow a slightly looser tolerance than pure element-wise f32.
    assert jnp.allclose(out, ref, atol=2e-3, rtol=2e-3), float(jnp.max(jnp.abs(out - ref)))
    print("KERNEL_OK")
</pallas_src>

<mosaic_0001>
module attributes {stable_mosaic.version = 11 : i64} {
  func.func @hexblock_kernel(%arg0: i32, %arg1: memref<1x8x512xf32, #tpu.memory_space<vmem>>, %arg2: memref<8x56xf32, #tpu.memory_space<vmem>>, %arg3: memref<8x1xf32, #tpu.memory_space<vmem>>, %arg4: memref<1x8x384xf32, #tpu.memory_space<vmem>>) attributes {dimension_semantics = [#tpu.dimension_semantics<parallel>], iteration_bounds = array<i64: 2>, scalar_prefetch = 0 : i64, scratch_operands = 0 : i64, tpu.core_type = #tpu.core_type<tc>, window_params = [{transform_indices = @transform_0, window_bounds = array<i64: 1, 8, 512>}, {pipeline_mode = #tpu.pipeline_mode<synchronous>, transform_indices = @transform_1, window_bounds = array<i64: 8, 56>}, {pipeline_mode = #tpu.pipeline_mode<synchronous>, transform_indices = @transform_2, window_bounds = array<i64: 8, 1>}, {transform_indices = @transform_3, window_bounds = array<i64: 1, 8, 384>}]} {
    %c0 = arith.constant 0 : index
    %c0_0 = arith.constant 0 : index
    %c0_1 = arith.constant 0 : index
    %0 = vector.load %arg1[%c0, %c0_0, %c0_1] : memref<1x8x512xf32, #tpu.memory_space<vmem>>, vector<1x8x512xf32>
    %1 = vector.shape_cast %0 : vector<1x8x512xf32> to vector<8x512xf32>
    %2 = tpu.iota {dimensions = array<i32: 1>} : vector<8x384xi32>
    %c2_i32 = arith.constant 2 : i32
    %c0_i32 = arith.constant 0 : i32
    %3 = arith.cmpi eq, %c2_i32, %c0_i32 : i32
    %c1_i32 = arith.constant 1 : i32
    %4 = arith.select %3, %c1_i32, %c2_i32 : i32
    %5 = vector.broadcast %4 : i32 to vector<8x384xi32>
    %6 = arith.remsi %2, %5 : vector<8x384xi32>
    %c0_i32_2 = arith.constant 0 : i32
    %7 = vector.broadcast %c0_i32_2 : i32 to vector<8x384xi32>
    %8 = arith.cmpi ne, %6, %7 : vector<8x384xi32>
    %c0_i32_3 = arith.constant 0 : i32
    %9 = vector.broadcast %c0_i32_3 : i32 to vector<8x384xi32>
    %10 = arith.cmpi slt, %6, %9 : vector<8x384xi32>
    %c0_i32_4 = arith.constant 0 : i32
    %11 = arith.cmpi slt, %4, %c0_i32_4 : i32
    %12 = vector.broadcast %11 : i1 to vector<8x384xi1>
    %13 = vector.broadcast %12 : vector<8x384xi1> to vector<8x384xi1>
    %14 = arith.xori %10, %13 : vector<8x384xi1>
    %15 = arith.andi %14, %8 : vector<8x384xi1>
    %16 = vector.broadcast %4 : i32 to vector<8x384xi32>
    %17 = arith.addi %6, %16 : vector<8x384xi32>
    %18 = arith.select %15, %17, %6 : vector<8x384xi1>, vector<8x384xi32>
    %c0_i32_5 = arith.constant 0 : i32
    %19 = vector.broadcast %c0_i32_5 : i32 to vector<8x384xi32>
    %20 = arith.cmpi eq, %18, %19 : vector<8x384xi32>
    %21 = vector.extract_strided_slice %1 {offsets = [0, 19], sizes = [8, 384], strides = [1, 1]} : vector<8x512xf32> to vector<8x384xf32>
    %22 = vector.extract_strided_slice %1 {offsets = [0, 1], sizes = [8, 384], strides = [1, 1]} : vector<8x512xf32> to vector<8x384xf32>
    %23 = vector.extract_strided_slice %1 {offsets = [0, 37], sizes = [8, 384], strides = [1, 1]} : vector<8x512xf32> to vector<8x384xf32>
    %24 = vector.extract_strided_slice %1 {offsets = [0, 0], sizes = [8, 384], strides = [1, 1]} : vector<8x512xf32> to vector<8x384xf32>
    %25 = vector.extract_strided_slice %1 {offsets = [0, 18], sizes = [8, 384], strides = [1, 1]} : vector<8x512xf32> to vector<8x384xf32>
    %26 = arith.select %20, %24, %25 : vector<8x384xi1>, vector<8x384xf32>
    %27 = vector.extract_strided_slice %1 {offsets = [0, 18], sizes = [8, 384], strides = [1, 1]} : vector<8x512xf32> to vector<8x384xf32>
    %28 = vector.extract_strided_slice %1 {offsets = [0, 36], sizes = [8, 384], strides = [1, 1]} : vector<8x512xf32> to vector<8x384xf32>
    %29 = arith.select %20, %27, %28 : vector<8x384xi1>, vector<8x384xf32>
    %30 = vector.extract_strided_slice %1 {offsets = [0, 2], sizes = [8, 384], strides = [1, 1]} : vector<8x512xf32> to vector<8x384xf32>
    %31 = vector.extract_strided_slice %1 {offsets = [0, 20], sizes = [8, 384], strides = [1, 1]} : vector<8x512xf32> to vector<8x384xf32>
    %32 = arith.select %20, %30, %31 : vector<8x384xi1>, vector<8x384xf32>
    %33 = vector.extract_strided_slice %1 {offsets = [0, 20], sizes = [8, 384], strides = [1, 1]} : vector<8x512xf32> to vector<8x384xf32>
    %34 = vector.extract_strided_slice %1 {offsets = [0, 38], sizes = [8, 384], strides = [1, 1]} : vector<8x512xf32> to vector<8x384xf32>
    %35 = arith.select %20, %33, %34 : vector<8x384xi1>, vector<8x384xf32>
    %36 = tpu.concatenate %22, %21, %23, %26, %29, %32, %35 in 0 : vector<8x384xf32>, vector<8x384xf32>, vector<8x384xf32>, vector<8x384xf32>, vector<8x384xf32>, vector<8x384xf32>, vector<8x384xf32> -> vector<56x384xf32>
    %c0_6 = arith.constant 0 : index
    %c0_7 = arith.constant 0 : index
    %37 = vector.load %arg2[%c0_6, %c0_7] : memref<8x56xf32, #tpu.memory_space<vmem>>, vector<8x56xf32>
    %cst = arith.constant dense<0.000000e+00> : vector<8x384xf32>
    %38 = tpu.matmul %37, %36, %cst {dimension_numbers = #tpu.dot_dimension_numbers<[1], [0], [0], [1], [0, 0, 1, 1], [], []>} : vector<8x56xf32>, vector<56x384xf32>, vector<8x384xf32> -> vector<8x384xf32>
    %c0_8 = arith.constant 0 : index
    %c0_9 = arith.constant 0 : index
    %39 = vector.load %arg3[%c0_8, %c0_9] : memref<8x1xf32, #tpu.memory_space<vmem>>, vector<8x1xf32>
    %40 = vector.broadcast %39 : vector<8x1xf32> to vector<8x384xf32>
    %41 = arith.addf %38, %40 : vector<8x384xf32>
    %42 = arith.addf %41, %21 : vector<8x384xf32>
    %cst_10 = arith.constant 0.000000e+00 : f32
    %43 = vector.broadcast %cst_10 : f32 to vector<8x384xf32>
    %44 = arith.maximumf %42, %43 : vector<8x384xf32>
    %c0_11 = arith.constant 0 : index
    %c0_12 = arith.constant 0 : index
    %c0_13 = arith.constant 0 : index
    %45 = vector.load %arg4[%c0_11, %c0_12, %c0_13] : memref<1x8x384xf32, #tpu.memory_space<vmem>>, vector<1x8x384xf32>
    %46 = vector.shape_cast %45 : vector<1x8x384xf32> to vector<8x384xf32>
    %47 = vector.shape_cast %44 : vector<8x384xf32> to vector<1x8x384xf32>
    tpu.vector_store %arg4[%c0_11, %c0_12, %c0_13], %47 {strides = array<i32>} : memref<1x8x384xf32, #tpu.memory_space<vmem>>, vector<1x8x384xf32>,
    return
  }
  func.func @transform_0(%arg0: i32) -> (i32, i32, i32) {
    %c0_i32 = arith.constant 0 : i32
    %c0_i32_0 = arith.constant 0 : i32
    %c0_i32_1 = arith.constant 0 : i32
    return %arg0, %c0_i32, %c0_i32_0 : i32, i32, i32
  }
  func.func @transform_1(%arg0: i32) -> (i32, i32) {
    %c0_i32 = arith.constant 0 : i32
    %c0_i32_0 = arith.constant 0 : i32
    %c0_i32_1 = arith.constant 0 : i32
    return %c0_i32, %c0_i32_0 : i32, i32
  }
  func.func @transform_2(%arg0: i32) -> (i32, i32) {
    %c0_i32 = arith.constant 0 : i32
    %c0_i32_0 = arith.constant 0 : i32
    %c0_i32_1 = arith.constant 0 : i32
    return %c0_i32, %c0_i32_0 : i32, i32
  }
  func.func @transform_3(%arg0: i32) -> (i32, i32, i32) {
    %c0_i32 = arith.constant 0 : i32
    %c0_i32_0 = arith.constant 0 : i32
    %c0_i32_1 = arith.constant 0 : i32
    return %arg0, %c0_i32, %c0_i32_0 : i32, i32, i32
  }
}

</mosaic_0001>

<llo_original>
// kernel: hexblock_forward.1
$region0: #{hexblock_forward.1}
  #allocation0 [shape = 'u32[]', space=smem, size = 0x4, offset = 0x4, fixed_abs, tag = 'smem constant byte address 0x4 - core index']
  #allocation1 [shape = 'u32[72,128]{1,0:T(1,128)}', space=vmem, size = 0x9000, scoped, tag = 'internal scratch']
  %s0 = inlined_call_operand.vmem [shape: f32[2,8,512], index: 0, kind: input, shape index: {}]
  %s1 = inlined_call_operand.vmem [shape: f32[8,56], index: 1, kind: input, shape index: {}]
  %s2 = inlined_call_operand.vmem [shape: f32[8,1], index: 2, kind: input, shape index: {}]
  %s3 = inlined_call_operand.vmem [shape: f32[2,8,384], index: 3, kind: output, shape index: {}]
  %s4 = sld [smem:[#allocation0]]
  $region45: #{hexblock_forward.1} parent=0
    _
  %s6 = ssub.s32 1, %s4
  %s7 = scalar_select 0, %s6, %s4
  loop: start=0, step=1, limit=4
  $region2: #{hexblock_forward.1} parent=0 // loop_pre_header
    _
  $region3: #{hexblock_forward.1} parent=0 // loop_header
    %s9 = sphi 0, %s13
    %p10 = scmp.ge.s32.totalorder %s9, 4
    %s19 = sphi 0, %s21
    %s22 = sphi 0, %s19
    %s23 = sphi 0, %s22
    %s39 = sphi 0, %s23
    %s43 = sphi 0, %s43
    %s45 = sphi 0, %s43
    %s46 = sphi 0, %s45
    %s60 = sphi 0, %s46
    %s64 = sphi 0, %s64
    %s66 = sphi 0, %s64
    %s67 = sphi 0, %s66
    %s81 = sphi 0, %s67
    %s87 = sphi 0, %s89
    %s90 = sphi 0, %s87
    %s91 = sphi 0, %s90
    %s107 = sphi 0, %s91
  $region4: #{hexblock_forward.1} parent=0 // loop_header_branch
    %12 = sbr.rel (%p10) target = $region8
  $region5: #{hexblock_forward.1} parent=0 // loop_body
    %s14 = ssub.s32 %s9, 1
    %s15 = ssub.s32 %s9, 2
    %s16 = sadd.s32 %s9, 1
    %s17 = ssub.s32 %s9, %s16
    %p18 = scmp.eq.s32.totalorder %s17, 0
    %s20 = sadd.s32 %s19, 1
    %s21 = scalar_select %p18, %s19, %s20
    %p24 = pneg %p18
    %p25 = scmp.eq.s32.totalorder %s9, 1
    %p26 = por %p24, %p25
    %p27 = scmp.ne.s32.totalorder %s19, %s22
    %p28 = scmp.eq.s32.totalorder %s9, 0
    %p29 = por %p27, %p28
    %p30 = scmp.ne.s32.totalorder %s19, %s22
    %p31 = scmp.eq.s32.totalorder %s14, 1
    %p32 = por %p30, %p31
    %p33 = scmp.ne.s32.totalorder %s22, %s23
    %p34 = scmp.eq.s32.totalorder %s14, 0
    %p35 = por %p33, %p34
    %p36 = scmp.ne.s32.totalorder %s22, %s23
    %p37 = scmp.eq.s32.totalorder %s15, 1
    %p38 = por %p36, %p37
    %p40 = scmp.ne.s32.totalorder %s23, %s39
    %p41 = scmp.eq.s32.totalorder %s15, 0
    %p42 = por %p40, %p41
    %s44 = sadd.s32 %s43, 1
    %p47 = scmp.eq.s32.totalorder %s9, 1
    %p48 = scmp.ne.s32.totalorder %s43, %s45
    %p49 = scmp.eq.s32.totalorder %s9, 0
    %p50 = por %p48, %p49
    %p51 = scmp.ne.s32.totalorder %s43, %s45
    %p52 = scmp.eq.s32.totalorder %s14, 1
    %p53 = por %p51, %p52
    %p54 = scmp.ne.s32.totalorder %s45, %s46
    %p55 = scmp.eq.s32.totalorder %s14, 0
    %p56 = por %p54, %p55
    %p57 = scmp.ne.s32.totalorder %s45, %s46
    %p58 = scmp.eq.s32.totalorder %s15, 1
    %p59 = por %p57, %p58
    %p61 = scmp.ne.s32.totalorder %s46, %s60
    %p62 = scmp.eq.s32.totalorder %s15, 0
    %p63 = por %p61, %p62
    %s65 = sadd.s32 %s64, 1
    %p68 = scmp.eq.s32.totalorder %s9, 1
    %p69 = scmp.ne.s32.totalorder %s64, %s66
    %p70 = scmp.eq.s32.totalorder %s9, 0
    %p71 = por %p69, %p70
    %p72 = scmp.ne.s32.totalorder %s64, %s66
    %p73 = scmp.eq.s32.totalorder %s14, 1
    %p74 = por %p72, %p73
    %p75 = scmp.ne.s32.totalorder %s66, %s67
    %p76 = scmp.eq.s32.totalorder %s14, 0
    %p77 = por %p75, %p76
    %p78 = scmp.ne.s32.totalorder %s66, %s67
    %p79 = scmp.eq.s32.totalorder %s15, 1
    %p80 = por %p78, %p79
    %p82 = scmp.ne.s32.totalorder %s67, %s81
    %p83 = scmp.eq.s32.totalorder %s15, 0
    %p84 = por %p82, %p83
    %s85 = ssub.s32 %s9, %s16
    %p86 = scmp.eq.s32.totalorder %s85, 0
    %s88 = sadd.s32 %s87, 1
    %s89 = scalar_select %p86, %s87, %s88
    %p92 = pneg %p86
    %p93 = scmp.eq.s32.totalorder %s9, 1
    %p94 = por %p92, %p93
    %p95 = scmp.ne.s32.totalorder %s87, %s90
    %p96 = scmp.eq.s32.totalorder %s9, 0
    %p97 = por %p95, %p96
    %p98 = scmp.ne.s32.totalorder %s87, %s90
    %p99 = scmp.eq.s32.totalorder %s14, 1
    %p100 = por %p98, %p99
    %p101 = scmp.ne.s32.totalorder %s90, %s91
    %p102 = scmp.eq.s32.totalorder %s14, 0
    %p103 = por %p101, %p102
    %p104 = scmp.ne.s32.totalorder %s90, %s91
    %p105 = scmp.eq.s32.totalorder %s15, 1
    %p106 = por %p104, %p105
    %p108 = scmp.ne.s32.totalorder %s91, %s107
    %p109 = scmp.eq.s32.totalorder %s15, 0
    %p110 = por %p108, %p109
    %p111 = scmp.le.s32.totalorder 1, %s9
    %p112 = scmp.lt.s32.totalorder %s9, 3
    %p113 = pnand %p111, %p112
    %p114 = pneg %p113
    // Predicated region
    $region9: #{hexblock_forward.1} parent=5 // pred_check
      _
    $region10: #{hexblock_forward.1} parent=5 // pred_check_branch
      %116 = sbr.rel (%p113) target = $region12
    $region11: #{hexblock_forward.1} parent=5 // pred_region
      %s117 = ssub.s32 %s9, 1
      // Predicated region
      $region13: #{hexblock_forward.1} parent=11 // pred_check
        %p118 = pneg %p56
      $region14: #{hexblock_forward.1} parent=11 // pred_check_branch
        %120 = sbr.rel (%p118) target = $region16
      $region15: #{hexblock_forward.1} parent=11 // pred_region
        _
      $region16: #{hexblock_forward.1} parent=11 // pred_fallthru
        _
      // Predicated region
      $region17: #{hexblock_forward.1} parent=11 // pred_check
        %p121 = pneg %p77
      $region18: #{hexblock_forward.1} parent=11 // pred_check_branch
        %123 = sbr.rel (%p121) target = $region20
      $region19: #{hexblock_forward.1} parent=11 // pred_region
        _
      $region20: #{hexblock_forward.1} parent=11 // pred_fallthru
        _
    $region12: #{hexblock_forward.1} parent=5 // pred_fallthru
      _
    %p124 = scmp.lt.s32.totalorder %s9, 2
    // Predicated region
    $region21: #{hexblock_forward.1} parent=5 // pred_check
      %p125 = pneg %p124
    $region22: #{hexblock_forward.1} parent=5 // pred_check_branch
      %127 = sbr.rel (%p125) target = $region24
    $region23: #{hexblock_forward.1} parent=5 // pred_region
      // Predicated region
      $region25: #{hexblock_forward.1} parent=23 // pred_check
        %p128 = pneg %p29
      $region26: #{hexblock_forward.1} parent=23 // pred_check_branch
        %130 = sbr.rel (%p128) target = $region28
      $region27: #{hexblock_forward.1} parent=23 // pred_region
        %p131 = scmp.lt.s32.totalorder %s9, 1
        %s132 = scalar_select %p131, %s9, 1
        %s133 = smul.addr %s132, 4
        %s134 = smul.addr %s133, 8
        %s135 = scalar_lea.vmem %s0, %s134
      $region28: #{hexblock_forward.1} parent=23 // pred_fallthru
        _
    $region24: #{hexblock_forward.1} parent=5 // pred_fallthru
      _
    %p136 = scmp.le.s32.totalorder 1, %s9
    %p137 = scmp.lt.s32.totalorder %s9, 3
    %p138 = pnand %p136, %p137
    %p139 = pneg %p138
    // Predicated region
    $region29: #{hexblock_forward.1} parent=5 // pred_check
      _
    $region30: #{hexblock_forward.1} parent=5 // pred_check_branch
      %141 = sbr.rel (%p138) target = $region32
    $region31: #{hexblock_forward.1} parent=5 // pred_region
      %s142 = ssub.s32 %s9, 1
      %p143 = scmp.lt.s32.totalorder %s14, 1
      %s144 = scalar_select %p143, %s14, 1
      %s145 = smul.addr %s144, 4
      %s146 = smul.addr %s145, 8
      %s147 = scalar_lea.vmem %s0, %s146
      %p148 = pneg %p35
      %p149 = pneg %p32
      %p150 = pneg %p56
      %p151 = pneg %p53
      %p152 = pneg %p77
      %p153 = pneg %p74
      %p154 = pneg %p103
      %p155 = pneg %p100
      %p156 = scmp.lt.s32.totalorder %s14, 1
      %s157 = scalar_select %p156, %s14, 1
      %s158 = smul.addr %s157, 3
      %s159 = smul.addr %s158, 8
      %s160 = scalar_lea.vmem %s3, %s159
      %p161 = scmp.lt.s32.totalorder %s14, 1
      %s162 = scalar_select %p161, %s14, 1
      %s163 = smul.addr %s162, 4
      %s164 = smul.addr %s163, 8
      %s165 = scalar_lea.vmem %s0, %s164
      %p166 = scmp.lt.s32.totalorder %s14, 1
      %s167 = scalar_select %p166, %s14, 1
      %s168 = smul.addr %s167, 3
      %s169 = smul.addr %s168, 8
      %s170 = scalar_lea.vmem %s3, %s169
      %v171 = vld [vmem:[%s165] sm:$0xff]
      %v172 = vld [vmem:[%s165 + $0x8] sm:$0xff]
      %v173 = vld [vmem:[%s165 + $0x10] sm:$0xff]
      %v174 = vld [vmem:[%s165 + $0x18] sm:$0xff]
      %v175 = vlaneseq
      %v176 = vand.u32 %v175, 127
      %v177 = vadd.s32 %v176, 128
      %v178 = vadd.s32 %v176, 256
      %vm179 = vcmp.lt.s32.totalorder %v176, 0
      %v180 = vsub.s32 0, %v176
      %v181 = vsel %vm179, %v180, %v176
      %v182 = vshrl.u32 %v181, 1
      %v183 = vand.u32 %v181, 1
      %v184 = vsub.s32 0, %v183
      %v185 = vsel %vm179, %v184, %v183
      %vm186 = vcmp.lt.s32.totalorder %v177, 0
      %v187 = vsub.s32 0, %v177
      %v188 = vsel %vm186, %v187, %v177
      %v189 = vshrl.u32 %v188, 1
      %v190 = vand.u32 %v188, 1
      %v191 = vsub.s32 0, %v190
      %v192 = vsel %vm186, %v191, %v190
      %vm193 = vcmp.lt.s32.totalorder %v178, 0
      %v194 = vsub.s32 0, %v178
      %v195 = vsel %vm193, %v194, %v178
      %v196 = vshrl.u32 %v195, 1
      %v197 = vand.u32 %v195, 1
      %v198 = vsub.s32 0, %v197
      %v199 = vsel %vm193, %v198, %v197
      %vm200 = vcmp.ne.s32.totalorder %v185, 0
      %vm201 = vcmp.ne.s32.totalorder %v192, 0
      %vm202 = vcmp.ne.s32.totalorder %v199, 0
      %vm203 = vcmp.lt.s32.totalorder %v185, 0
      %vm204 = vcmp.lt.s32.totalorder %v192, 0
      %vm205 = vcmp.lt.s32.totalorder %v199, 0
      %vm206 = vmand %vm203, %vm200
      %vm207 = vmand %vm204, %vm201
      %vm208 = vmand %vm205, %vm202
      %v209 = vadd.s32 %v185, 2
      %v210 = vadd.s32 %v192, 2
      %v211 = vadd.s32 %v199, 2
      %v212 = vsel %vm206, %v209, %v185
      %v213 = vsel %vm207, %v210, %v192
      %v214 = vsel %vm208, %v211, %v199
      %vm215 = vcmp.eq.s32.totalorder %v212, 0
      %vm216 = vcmp.eq.s32.totalorder %v213, 0
      %vm217 = vcmp.eq.s32.totalorder %v214, 0
      %222 = vrot.lane.b32.xlu0 %v171, 110
      %v223 = vpop.permute.xlu0 %222
      %224 = vrot.lane.b32.xlu0 %v172, 110
      %v225 = vpop.permute.xlu0 %224
      %226 = vrot.lane.b32.xlu0 %v173, 110
      %v227 = vpop.permute.xlu0 %226
      %228 = vrot.lane.b32.xlu0 %v174, 110
      %v229 = vpop.permute.xlu0 %228
      %vm230 = vcmask 900096
      %v231 = vsel %vm230, %v223, %v225
      %v232 = vsel %vm230, %v225, %v227
      %v233 = vsel %vm230, %v227, %v229
      %v237 = vsel %vm215, %v171, %v231
      %v238 = vsel %vm216, %v172, %v232
      %v239 = vsel %vm217, %v173, %v233
      %240 = vrot.lane.b32.xlu0 %v171, 92
      %v241 = vpop.permute.xlu0 %240
      %242 = vrot.lane.b32.xlu0 %v172, 92
      %v243 = vpop.permute.xlu0 %242
      %244 = vrot.lane.b32.xlu0 %v173, 92
      %v245 = vpop.permute.xlu0 %244
      %246 = vrot.lane.b32.xlu0 %v174, 92
      %v247 = vpop.permute.xlu0 %246
      %vm248 = vcmask 752640
      %v249 = vsel %vm248, %v241, %v243
      %v250 = vsel %vm248, %v243, %v245
      %v251 = vsel %vm248, %v245, %v247
      %v255 = vsel %vm215, %v231, %v249
      %v256 = vsel %vm216, %v232, %v250
      %v257 = vsel %vm217, %v233, %v251
      %258 = vrot.lane.b32.xlu0 %v171, 126
      %v259 = vpop.permute.xlu0 %258
      %260 = vrot.lane.b32.xlu0 %v172, 126
      %v261 = vpop.permute.xlu0 %260
      %262 = vrot.lane.b32.xlu0 %v173, 126
      %v263 = vpop.permute.xlu0 %262
      %264 = vrot.lane.b32.xlu0 %v174, 126
      %v265 = vpop.permute.xlu0 %264
      %vm266 = vcmask 1031168
      %v267 = vsel %vm266, %v259, %v261
      %v268 = vsel %vm266, %v261, %v263
      %v269 = vsel %vm266, %v263, %v265
      %273 = vrot.lane.b32.xlu0 %v171, 108
      %v274 = vpop.permute.xlu0 %273
      %275 = vrot.lane.b32.xlu0 %v172, 108
      %v276 = vpop.permute.xlu0 %275
      %277 = vrot.lane.b32.xlu0 %v173, 108
      %v278 = vpop.permute.xlu0 %277
      %279 = vrot.lane.b32.xlu0 %v174, 108
      %v280 = vpop.permute.xlu0 %279
      %vm281 = vcmask 883712
      %v282 = vsel %vm281, %v274, %v276
      %v283 = vsel %vm281, %v276, %v278
      %v284 = vsel %vm281, %v278, %v280
      %v288 = vsel %vm215, %v267, %v282
      %v289 = vsel %vm216, %v268, %v283
      %v290 = vsel %vm217, %v269, %v284
      %291 = vrot.lane.b32.xlu0 %v171, 90
      %v292 = vpop.permute.xlu0 %291
      %293 = vrot.lane.b32.xlu0 %v172, 90
      %v294 = vpop.permute.xlu0 %293
      %295 = vrot.lane.b32.xlu0 %v173, 90
      %v296 = vpop.permute.xlu0 %295
      %297 = vrot.lane.b32.xlu0 %v174, 90
      %v298 = vpop.permute.xlu0 %297
      %vm299 = vcmask 736256
      %v300 = vsel %vm299, %v292, %v294
      %v301 = vsel %vm299, %v294, %v296
      %v302 = vsel %vm299, %v296, %v298
      %v306 = vsel %vm215, %v282, %v300
      %v307 = vsel %vm216, %v283, %v301
      %v308 = vsel %vm217, %v284, %v302
      %312 = vrot.lane.b32.xlu0 %v237, 1
      %v313 = vpop.permute.xlu0 %312
      %314 = vrot.lane.b32.xlu0 %v238, 1
      %v315 = vpop.permute.xlu0 %314
      %316 = vrot.lane.b32.xlu0 %v239, 1
      %v317 = vpop.permute.xlu0 %316
      %vm318 = vcmask 7168
      %v319 = vsel %vm318, %v313, %v315
      %v320 = vsel %vm318, %v315, %v317
      %324 = vrot.lane.b32.xlu0 %v255, 1
      %v325 = vpop.permute.xlu0 %324
      %326 = vrot.lane.b32.xlu0 %v256, 1
      %v327 = vpop.permute.xlu0 %326
      %328 = vrot.lane.b32.xlu0 %v257, 1
      %v329 = vpop.permute.xlu0 %328
      %v330 = vsel %vm318, %v325, %v327
      %v331 = vsel %vm318, %v327, %v329
      %335 = vrot.lane.b32.xlu0 %v288, 1
      %v336 = vpop.permute.xlu0 %335
      %337 = vrot.lane.b32.xlu0 %v289, 1
      %v338 = vpop.permute.xlu0 %337
      %339 = vrot.lane.b32.xlu0 %v290, 1
      %v340 = vpop.permute.xlu0 %339
      %v341 = vsel %vm318, %v336, %v338
      %v342 = vsel %vm318, %v338, %v340
      %346 = vrot.lane.b32.xlu0 %v306, 1
      %v347 = vpop.permute.xlu0 %346
      %348 = vrot.lane.b32.xlu0 %v307, 1
      %v349 = vpop.permute.xlu0 %348
      %350 = vrot.lane.b32.xlu0 %v308, 1
      %v351 = vpop.permute.xlu0 %350
      %v352 = vsel %vm318, %v347, %v349
      %v353 = vsel %vm318, %v349, %v351
      %v354 = vld [vmem:[%s1] sm:$0xff]
      %v355 = vld [vmem:[%s2] sm:$0xff]
      %357 = vset.pattern.permute.xlu0 0
      %358 = vperm.xlu0 %357, %v355
      %v359 = vpop.permute.xlu0 %358
      %361 = vrot.lane.b32.xlu0 %v171, 127
      %v362 = vpop.permute.xlu0 %361
      %363 = vrot.lane.b32.xlu0 %v172, 127
      %v364 = vpop.permute.xlu0 %363
      %365 = vrot.lane.b32.xlu0 %v173, 127
      %v366 = vpop.permute.xlu0 %365
      %367 = vrot.lane.b32.xlu0 %v174, 127
      %v368 = vpop.permute.xlu0 %367
      %369 = vrot.lane.b32.xlu0 %v231, 127
      %v370 = vpop.permute.xlu0 %369
      %371 = vrot.lane.b32.xlu0 %v232, 127
      %v372 = vpop.permute.xlu0 %371
      %373 = vrot.lane.b32.xlu0 %v233, 127
      %v374 = vpop.permute.xlu0 %373
      %375 = vrot.lane.b32.xlu0 %v229, 127
      %v376 = vpop.permute.xlu0 %375
      %377 = vrot.lane.b32.xlu0 %v249, 127
      %v378 = vpop.permute.xlu0 %377
      %379 = vrot.lane.b32.xlu0 %v250, 127
      %v380 = vpop.permute.xlu0 %379
      %381 = vrot.lane.b32.xlu0 %v251, 127
      %v382 = vpop.permute.xlu0 %381
      %383 = vrot.lane.b32.xlu0 %v247, 127
      %v384 = vpop.permute.xlu0 %383
      %385 = vrot.lane.b32.xlu0 %v313, 127
      %v386 = vpop.permute.xlu0 %385
      %387 = vrot.lane.b32.xlu0 %v319, 127
      %v388 = vpop.permute.xlu0 %387
      %389 = vrot.lane.b32.xlu0 %v320, 127
      %v390 = vpop.permute.xlu0 %389
      %391 = vrot.lane.b32.xlu0 %v317, 127
      %v392 = vpop.permute.xlu0 %391
      %393 = vrot.lane.b32.xlu0 %v325, 127
      %v394 = vpop.permute.xlu0 %393
      %395 = vrot.lane.b32.xlu0 %v330, 127
      %v396 = vpop.permute.xlu0 %395
      %397 = vrot.lane.b32.xlu0 %v331, 127
      %v398 = vpop.permute.xlu0 %397
      %399 = vrot.lane.b32.xlu0 %v329, 127
      %v400 = vpop.permute.xlu0 %399
      %401 = vrot.lane.b32.xlu0 %v336, 127
      %v402 = vpop.permute.xlu0 %401
      %403 = vrot.lane.b32.xlu0 %v341, 127
      %v404 = vpop.permute.xlu0 %403
      %405 = vrot.lane.b32.xlu0 %v342, 127
      %v406 = vpop.permute.xlu0 %405
      %407 = vrot.lane.b32.xlu0 %v340, 127
      %v408 = vpop.permute.xlu0 %407
      %409 = vrot.lane.b32.xlu0 %v347, 127
      %v410 = vpop.permute.xlu0 %409
      %411 = vrot.lane.b32.xlu0 %v352, 127
      %v412 = vpop.permute.xlu0 %411
      %413 = vrot.lane.b32.xlu0 %v353, 127
      %v414 = vpop.permute.xlu0 %413
      %415 = vrot.lane.b32.xlu0 %v351, 127
      %v416 = vpop.permute.xlu0 %415
      %vm417 = vcmask 1039360
      %v418 = vsel %vm417, %v362, %v364
      %v419 = vsel %vm417, %v364, %v366
      %v420 = vsel %vm417, %v366, %v368
      %v421 = vsel %vm417, %v370, %v372
      %v422 = vsel %vm417, %v372, %v374
      %v423 = vsel %vm417, %v374, %v376
      %v424 = vsel %vm417, %v378, %v380
      %v425 = vsel %vm417, %v380, %v382
      %v426 = vsel %vm417, %v382, %v384
      %v427 = vsel %vm417, %v386, %v388
      %v428 = vsel %vm417, %v388, %v390
      %v429 = vsel %vm417, %v390, %v392
      %v430 = vsel %vm417, %v394, %v396
      %v431 = vsel %vm417, %v396, %v398
      %v432 = vsel %vm417, %v398, %v400
      %v433 = vsel %vm417, %v402, %v404
      %v434 = vsel %vm417, %v404, %v406
      %v435 = vsel %vm417, %v406, %v408
      %v436 = vsel %vm417, %v410, %v412
      %v437 = vsel %vm417, %v412, %v414
      %v438 = vsel %vm417, %v414, %v416
      %vm460 = vcmask 457728
      %v462 = vsel %vm460, %v354, 0
      %464 = vmatpush.msra.mxu0 0.0
      %465 = vmatpush.msra.mxu0 0.0
      %466 = vmatpush.msra.mxu0 0.0
      %467 = vmatpush.msra.mxu0 0.0
      %468 = vmatpush.msra.mxu0 0.0
      %469 = vmatpush.msra.mxu0 0.0
      %470 = vmatpush.msra.mxu0 0.0
      %471 = vmatpush.msra.mxu0 0.0
      %472 = vmatpush.msra.mxu0 0.0
      %473 = vmatpush.msra.mxu0 %v436
      %474 = vmatpush.msra.mxu0 %v433
      %475 = vmatpush.msra.mxu0 %v430
      %476 = vmatpush.msra.mxu0 %v427
      %477 = vmatpush.msra.mxu0 %v424
      %478 = vmatpush.msra.mxu0 %v421
      %479 = vmatpush.msra.mxu0 %v418
      %480 = vmatmul.f32.gmra.mxu0 %v462
      %v481 = vpop.f32.mrf.mxu0
      %v482 = vadd.f32 %v359, %v481
      %483 = vdwg.mxu0
      %484 = vmatpush.msra.mxu0 0.0
      %485 = vmatpush.msra.mxu0 0.0
      %486 = vmatpush.msra.mxu0 0.0
      %487 = vmatpush.msra.mxu0 0.0
      %488 = vmatpush.msra.mxu0 0.0
      %489 = vmatpush.msra.mxu0 0.0
      %490 = vmatpush.msra.mxu0 0.0
      %491 = vmatpush.msra.mxu0 0.0
      %492 = vmatpush.msra.mxu0 0.0
      %493 = vmatpush.msra.mxu0 %v437
      %494 = vmatpush.msra.mxu0 %v434
      %495 = vmatpush.msra.mxu0 %v431
      %496 = vmatpush.msra.mxu0 %v428
      %497 = vmatpush.msra.mxu0 %v425
      %498 = vmatpush.msra.mxu0 %v422
      %499 = vmatpush.msra.mxu0 %v419
      %500 = vmatmul.f32.gmra.mxu0 %v462
      %v501 = vpop.f32.mrf.mxu0
      %v502 = vadd.f32 %v359, %v501
      %503 = vdwg.mxu0
      %504 = vmatpush.msra.mxu0 0.0
      %505 = vmatpush.msra.mxu0 0.0
      %506 = vmatpush.msra.mxu0 0.0
      %507 = vmatpush.msra.mxu0 0.0
      %508 = vmatpush.msra.mxu0 0.0
      %509 = vmatpush.msra.mxu0 0.0
      %510 = vmatpush.msra.mxu0 0.0
      %511 = vmatpush.msra.mxu0 0.0
      %512 = vmatpush.msra.mxu0 0.0
      %513 = vmatpush.msra.mxu0 %v438
      %514 = vmatpush.msra.mxu0 %v435
      %515 = vmatpush.msra.mxu0 %v432
      %516 = vmatpush.msra.mxu0 %v429
      %517 = vmatpush.msra.mxu0 %v426
      %518 = vmatpush.msra.mxu0 %v423
      %519 = vmatpush.msra.mxu0 %v420
      %520 = vmatmul.f32.gmra.mxu0 %v462
      %v521 = vpop.f32.mrf.mxu0
      %v522 = vadd.f32 %v359, %v521
      %523 = vdwg.mxu0
      %524 = vrot.lane.b32.xlu0 %v171, 109
      %v525 = vpop.permute.xlu0 %524
      %526 = vrot.lane.b32.xlu0 %v172, 109
      %v527 = vpop.permute.xlu0 %526
      %528 = vrot.lane.b32.xlu0 %v173, 109
      %v529 = vpop.permute.xlu0 %528
      %530 = vrot.lane.b32.xlu0 %v174, 109
      %v531 = vpop.permute.xlu0 %530
      %vm532 = vcmask 891904
      %v533 = vsel %vm532, %v525, %v527
      %v534 = vsel %vm532, %v527, %v529
      %v535 = vsel %vm532, %v529, %v531
      %v539 = vadd.f32 %v482, %v533
      %v540 = vadd.f32 %v502, %v534
      %v541 = vadd.f32 %v522, %v535
      %v542 = vmax.f32 %v539, 0.0
      %v543 = vmax.f32 %v540, 0.0
      %v544 = vmax.f32 %v541, 0.0
      %545 = vst [vmem:[%s170] sm:$0xff] %v542
      %546 = vst [vmem:[%s170 + $0x8] sm:$0xff] %v543
      %547 = vst [vmem:[%s170 + $0x10] sm:$0xff] %v544
      %p548 = scmp.lt.s32.totalorder %s14, 1
      %s549 = scalar_select %p548, %s14, 1
      %s550 = smul.addr %s549, 3
      %s551 = smul.addr %s550, 8
      %s552 = scalar_lea.vmem %s3, %s551
      // Predicated region
      $region33: #{hexblock_forward.1} parent=31 // pred_check
        %p553 = pneg %p100
      $region34: #{hexblock_forward.1} parent=31 // pred_check_branch
        %555 = sbr.rel (%p553) target = $region36
      $region35: #{hexblock_forward.1} parent=31 // pred_region
        _
      $region36: #{hexblock_forward.1} parent=31 // pred_fallthru
        _
    $region32: #{hexblock_forward.1} parent=5 // pred_fallthru
      _
    %p556 = scmp.le.s32.totalorder 2, %s9
    // Predicated region
    $region37: #{hexblock_forward.1} parent=5 // pred_check
      %p557 = pneg %p556
    $region38: #{hexblock_forward.1} parent=5 // pred_check_branch
      %559 = sbr.rel (%p557) target = $region40
    $region39: #{hexblock_forward.1} parent=5 // pred_region
      %s560 = ssub.s32 %s9, 2
      // Predicated region
      $region41: #{hexblock_forward.1} parent=39 // pred_check
        %p561 = pneg %p106
      $region42: #{hexblock_forward.1} parent=39 // pred_check_branch
        %563 = sbr.rel (%p561) target = $region44
      $region43: #{hexblock_forward.1} parent=39 // pred_region
        %p564 = scmp.lt.s32.totalorder %s15, 1
        %s565 = scalar_select %p564, %s15, 1
        %s566 = smul.addr %s565, 3
        %s567 = smul.addr %s566, 8
        %s568 = scalar_lea.vmem %s3, %s567
      $region44: #{hexblock_forward.1} parent=39 // pred_fallthru
        _
    $region40: #{hexblock_forward.1} parent=5 // pred_fallthru
      _
  $region6: #{hexblock_forward.1} parent=0 // loop_footer
    %s13 = sadd.s32 1, %s9
  $region7: #{hexblock_forward.1} parent=0 // loop_footer_branch
    %8 = sbr.rel target = $region3
  $region8: #{hexblock_forward.1} parent=0 // loop_exit
    _

</llo_original>
